<compile_context>
chip_gen: v7x
topology: tpu7x:2x2x1
jax: 0.10.0
libtpu: 0.0.40
codegen_flags: <defaults>
</compile_context>

<pallas_src>
import functools

import jax
import jax.numpy as jnp
from jax.experimental import pallas as pl
from jax.experimental.pallas import tpu as pltpu

_BN_EPS = 1e-5
_LANES = 128
_TL_MAX = 512    # output rows per grid step (kept small enough for v7x VMEM)
_HR = 8          # forward-halo rows (phase-packed coords), multiple of 8


def _round_up(x, m):
    return (x + m - 1) // m * m


def _fold_bn(bn):
    """Fold eval-mode BatchNorm into per-channel (scale, shift), shape (C,)."""
    scale = bn["gamma"] * jax.lax.rsqrt(bn["var"] + _BN_EPS)
    shift = bn["beta"] - bn["mean"] * scale
    return scale, shift


def _pad_axis(a, axis, target):
    pad = [(0, 0)] * a.ndim
    pad[axis] = (0, target - a.shape[axis])
    return jnp.pad(a, pad)


# ----------------------------------------------------------------------------
# Kernel factory (statics are closed over; projection picks the shortcut path)
# ----------------------------------------------------------------------------
def _make_kernel(*, stride, TL, L1, c_in_p, c_out_p, projection):
    s = stride

    def kernel(xm_ref, xh_ref, w1_ref, w2_ref, b1_ref, b2_ref, *rest):
        if projection:
            ws_ref, bs_ref, o_ref, comb, slab1, slab2 = rest
        else:
            o_ref, comb, slab1, slab2 = rest

        t = pl.program_id(1)

        # Assemble the phase-packed input tile + its 8-row forward halo once.
        comb[0:TL, :] = xm_ref[...]
        comb[TL:TL + _HR, :] = xh_ref[...]

        # conv1: build a (TL+2, 3*C_in) tap slab (static slices only; the
        # stride is handled by the phase packing) -> single K=3*C_in matmul.
        # BN1 scale is already folded into w1; only the bias is added here.
        for k in range(3):
            q, d = k % s, k // s
            slab1[:, k * c_in_p:(k + 1) * c_in_p] = (
                comb[d:d + TL + 2, q * c_in_p:(q + 1) * c_in_p])
        h = jnp.dot(slab1[...], w1_ref[...],
                    preferred_element_type=jnp.float32)
        h = jnp.maximum(h + b1_ref[...], 0.0)

        # conv2 zero-padding is applied AFTER BN1+ReLU, so the halo rows that
        # correspond to conv1 indices -1 / >= L1 must be exactly zero.
        j = jax.lax.broadcasted_iota(jnp.int32, (TL + 2, 1), 0)
        m = t * TL - 1 + j
        h = jnp.where((m >= 0) & (m < L1), h, 0.0)

        # conv2: (TL, 3*C_out) slab -> single K=3*C_out matmul (bf16 operands,
        # f32 accumulation), then BN2 bias.
        hb = h.astype(slab2.dtype)
        slab2[:, 0:c_out_p] = hb[0:TL]
        slab2[:, c_out_p:2 * c_out_p] = hb[1:TL + 1]
        slab2[:, 2 * c_out_p:3 * c_out_p] = hb[2:TL + 2]
        y = jnp.dot(slab2[...], w2_ref[...],
                    preferred_element_type=jnp.float32)
        y = y + b2_ref[...]

        # Shortcut.
        if projection:
            if s == 1:
                xs = comb[2:TL + 2, :]
            else:
                xs = comb[1:TL + 1, c_in_p:2 * c_in_p]
            sc = jnp.dot(xs, ws_ref[...],
                         preferred_element_type=jnp.float32)
            sc = sc + bs_ref[...]
        else:
            # identity shortcut (C_in == C_out, stride == 1): no matmul at all.
            sc = comb[2:TL + 2, :].astype(jnp.float32)

        o_ref[...] = jnp.maximum(y + sc, 0.0)

    return kernel


# ----------------------------------------------------------------------------
# Wrapper: parameter folding, channel padding, phase packing, pallas_call
# ----------------------------------------------------------------------------
@functools.partial(jax.jit, static_argnames=("stride",))
def residual_conv1d_block(x, params, stride=1):
    """x: (N, C_in, L) float32 (PyTorch NCW). Returns (N, C_out, L_out) f32."""
    s = int(stride)
    w1, w2 = params["w1"], params["w2"]
    N, C_in, L = x.shape
    C_out = w1.shape[0]
    L1 = (L - 1) // s + 1                     # conv k=3, pad=1, stride=s

    c_in_p = _round_up(C_in, _LANES)
    c_out_p = _round_up(C_out, _LANES)

    TL = min(_TL_MAX, _round_up(L1, 8))       # length tile
    T = (L1 + TL - 1) // TL
    L1p = T * TL

    projection = (C_in != C_out) or (s != 1)

    # ---- fold BN (eval semantics) into the conv weights; keep bias separate.
    s1, b1 = _fold_bn(params["bn1"])
    s2, b2 = _fold_bn(params["bn2"])

    def conv_w(w, scale, cin_p):              # (Cout, Cin, K) -> (K*cin_p, Coutp)
        K = w.shape[2]
        wt = jnp.transpose(w, (2, 1, 0)) * scale[None, None, :]   # (K, Cin, Cout)
        wt = _pad_axis(_pad_axis(wt, 1, cin_p), 2, c_out_p)
        return wt.reshape(K * cin_p, c_out_p).astype(jnp.bfloat16)

    w1_mat = conv_w(w1, s1, c_in_p)           # (3*C_in_p , C_out_p)
    w2_mat = conv_w(w2, s2, c_out_p)          # (3*C_out_p, C_out_p)
    b1_row = _pad_axis(b1, 0, c_out_p).reshape(1, c_out_p).astype(jnp.float32)
    b2_row = _pad_axis(b2, 0, c_out_p).reshape(1, c_out_p).astype(jnp.float32)

    # ---- input: NCW -> NLC, channel pad, length pad, phase-pack by stride.
    x_nlc = jnp.transpose(x, (0, 2, 1)).astype(jnp.bfloat16)      # (N, L, C_in)
    x_nlc = _pad_axis(x_nlc, 2, c_in_p)                           # (N, L, C_in_p)
    front = s + 1                                                 # conv pad + phase shift
    xr_len = T * TL + _HR
    back = xr_len * s - front - L                                 # >= 0 by construction
    X = jnp.pad(x_nlc, ((0, 0), (front, back), (0, 0)))           # (N, xr_len*s, C_in_p)
    Xr = X.reshape(N, xr_len, s * c_in_p)                         # phase-packed (free reshape)

    # Forward halo: first _HR phase-packed rows of the next tile (tiny tensor).
    idx = ((jnp.arange(T) + 1) * TL)[:, None] + jnp.arange(_HR)[None, :]
    Xh = jnp.take(Xr, idx.reshape(-1), axis=1).reshape(N, T, _HR, s * c_in_p)

    inputs = [Xr, Xh, w1_mat, w2_mat, b1_row, b2_row]
    in_specs = [
        pl.BlockSpec((None, TL, s * c_in_p), lambda n, t: (n, t, 0)),
        pl.BlockSpec((None, None, _HR, s * c_in_p), lambda n, t: (n, t, 0, 0)),
        pl.BlockSpec((3 * c_in_p, c_out_p), lambda n, t: (0, 0)),
        pl.BlockSpec((3 * c_out_p, c_out_p), lambda n, t: (0, 0)),
        pl.BlockSpec((1, c_out_p), lambda n, t: (0, 0)),
        pl.BlockSpec((1, c_out_p), lambda n, t: (0, 0)),
    ]
    if projection:
        ss, sb = _fold_bn(params["bns"])
        ws_t = jnp.transpose(params["ws"][:, :, 0], (1, 0)) * ss[None, :]
        ws_mat = _pad_axis(_pad_axis(ws_t, 0, c_in_p), 1,
                           c_out_p).astype(jnp.bfloat16)
        bs_row = _pad_axis(sb, 0, c_out_p).reshape(1, c_out_p).astype(jnp.float32)
        inputs += [ws_mat, bs_row]
        in_specs += [
            pl.BlockSpec((c_in_p, c_out_p), lambda n, t: (0, 0)),
            pl.BlockSpec((1, c_out_p), lambda n, t: (0, 0)),
        ]

    kernel = _make_kernel(stride=s, TL=TL, L1=L1, c_in_p=c_in_p,
                          c_out_p=c_out_p, projection=projection)

    out = pl.pallas_call(
        kernel,
        out_shape=jax.ShapeDtypeStruct((N, L1p, c_out_p), jnp.float32),
        grid=(N, T),
        in_specs=in_specs,
        out_specs=pl.BlockSpec((None, TL, c_out_p), lambda n, t: (n, t, 0)),
        scratch_shapes=[
            pltpu.VMEM((TL + _HR, s * c_in_p), jnp.bfloat16),   # input tile + halo
            pltpu.VMEM((TL + 2, 3 * c_in_p), jnp.bfloat16),     # conv1 tap slab
            pltpu.VMEM((TL, 3 * c_out_p), jnp.bfloat16),        # conv2 tap slab
        ],
        compiler_params=pltpu.CompilerParams(
            dimension_semantics=("parallel", "parallel")),
    )(*inputs)

    out = out[:, :L1, :C_out]                                   # drop L/C padding
    return jnp.transpose(out, (0, 2, 1))                        # (N, C_out, L1)


# ----------------------------------------------------------------------------
# Pure-JAX reference (f32) for correctness checking
# ----------------------------------------------------------------------------
def _conv1d(x, w, stride, pad):
    return jax.lax.conv_general_dilated(
        x, w, window_strides=(stride,), padding=[(pad, pad)],
        dimension_numbers=("NCH", "OIH", "NCH"))


def _bn_apply(y, bn):
    sc, sh = _fold_bn(bn)
    return y * sc[None, :, None] + sh[None, :, None]


def reference_block(x, params, stride=1):
    C_in = x.shape[1]
    C_out = params["w1"].shape[0]
    h = _conv1d(x, params["w1"], stride, 1)
    h = jax.nn.relu(_bn_apply(h, params["bn1"]))
    y = _conv1d(h, params["w2"], 1, 1)
    y = _bn_apply(y, params["bn2"])
    if (C_in != C_out) or (stride != 1):
        sc = _conv1d(x, params["ws"], stride, 0)
        sc = _bn_apply(sc, params["bns"])
    else:
        sc = x
    return jax.nn.relu(y + sc)


# ----------------------------------------------------------------------------
if __name__ == "__main__":
    key = jax.random.PRNGKey(0)

    def make_bn(k, c):
        k0, k1, k2, k3 = jax.random.split(k, 4)
        return dict(
            gamma=jax.random.uniform(k0, (c,), jnp.float32, 0.5, 1.5),
            beta=jax.random.normal(k1, (c,), jnp.float32) * 0.1,
            mean=jax.random.normal(k2, (c,), jnp.float32) * 0.1,
            var=jax.random.uniform(k3, (c,), jnp.float32, 0.5, 1.5),
        )

    def make_params(k, c_in, c_out):
        ks = jax.random.split(k, 6)
        return dict(
            w1=jax.random.normal(ks[0], (c_out, c_in, 3), jnp.float32) * 0.3,
            w2=jax.random.normal(ks[1], (c_out, c_out, 3), jnp.float32) * 0.3,
            ws=jax.random.normal(ks[2], (c_out, c_in, 1), jnp.float32) * 0.3,
            bn1=make_bn(ks[3], c_out),
            bn2=make_bn(ks[4], c_out),
            bns=make_bn(ks[5], c_out),
        )

    configs = [
        dict(N=2, C_in=4, C_out=8, L=16, stride=1),   # projection shortcut
        dict(N=2, C_in=8, C_out=8, L=16, stride=1),   # identity shortcut
        dict(N=2, C_in=4, C_out=8, L=17, stride=2),   # strided projection
    ]
    for i, cfg in enumerate(configs):
        kp, kx, key = jax.random.split(key, 3)
        params = make_params(kp, cfg["C_in"], cfg["C_out"])
        x = jax.random.normal(kx, (cfg["N"], cfg["C_in"], cfg["L"]), jnp.float32)

        out = jax.block_until_ready(
            residual_conv1d_block(x, params, stride=cfg["stride"]))
        ref = jax.block_until_ready(
            reference_block(x, params, stride=cfg["stride"]))

        assert out.shape == ref.shape, (cfg, out.shape, ref.shape)
        # bf16 matmul operands with f32 accumulation -> loose-ish tolerance.
        err = float(jnp.max(jnp.abs(out - ref)))
        assert jnp.allclose(out, ref, atol=5e-2, rtol=5e-2), (cfg, err)

    print("KERNEL_OK")
</pallas_src>

<mosaic_0001>
module attributes {stable_mosaic.version = 11 : i64} {
  func.func @kernel(%arg0: i32, %arg1: i32, %arg2: memref<1x16x128xbf16, #tpu.memory_space<vmem>>, %arg3: memref<1x1x8x128xbf16, #tpu.memory_space<vmem>>, %arg4: memref<384x128xbf16, #tpu.memory_space<vmem>>, %arg5: memref<384x128xbf16, #tpu.memory_space<vmem>>, %arg6: memref<1x128xf32, #tpu.memory_space<vmem>>, %arg7: memref<1x128xf32, #tpu.memory_space<vmem>>, %arg8: memref<128x128xbf16, #tpu.memory_space<vmem>>, %arg9: memref<1x128xf32, #tpu.memory_space<vmem>>, %arg10: memref<1x16x128xf32, #tpu.memory_space<vmem>>, %arg11: memref<24x128xbf16, #tpu.memory_space<vmem>>, %arg12: memref<18x384xbf16, #tpu.memory_space<vmem>>, %arg13: memref<16x384xbf16, #tpu.memory_space<vmem>>) attributes {dimension_semantics = [#tpu.dimension_semantics<parallel>, #tpu.dimension_semantics<parallel>], iteration_bounds = array<i64: 2, 1>, scalar_prefetch = 0 : i64, scratch_operands = 3 : i64, tpu.core_type = #tpu.core_type<tc>, window_params = [{transform_indices = @transform_0, window_bounds = array<i64: 1, 16, 128>}, {transform_indices = @transform_1, window_bounds = array<i64: 1, 1, 8, 128>}, {pipeline_mode = #tpu.pipeline_mode<synchronous>, transform_indices = @transform_2, window_bounds = array<i64: 384, 128>}, {pipeline_mode = #tpu.pipeline_mode<synchronous>, transform_indices = @transform_3, window_bounds = array<i64: 384, 128>}, {pipeline_mode = #tpu.pipeline_mode<synchronous>, transform_indices = @transform_4, window_bounds = array<i64: 1, 128>}, {pipeline_mode = #tpu.pipeline_mode<synchronous>, transform_indices = @transform_5, window_bounds = array<i64: 1, 128>}, {pipeline_mode = #tpu.pipeline_mode<synchronous>, transform_indices = @transform_6, window_bounds = array<i64: 128, 128>}, {pipeline_mode = #tpu.pipeline_mode<synchronous>, transform_indices = @transform_7, window_bounds = array<i64: 1, 128>}, {transform_indices = @transform_8, window_bounds = array<i64: 1, 16, 128>}]} {
    %c0 = arith.constant 0 : index
    %c0_0 = arith.constant 0 : index
    %c0_1 = arith.constant 0 : index
    %0 = vector.load %arg2[%c0, %c0_0, %c0_1] : memref<1x16x128xbf16, #tpu.memory_space<vmem>>, vector<1x16x128xbf16>
    %1 = vector.shape_cast %0 : vector<1x16x128xbf16> to vector<16x128xbf16>
    %c0_2 = arith.constant 0 : index
    %c0_3 = arith.constant 0 : index
    %2 = vector.load %arg11[%c0_2, %c0_3] : memref<24x128xbf16, #tpu.memory_space<vmem>>, vector<16x128xbf16>
    tpu.vector_store %arg11[%c0_2, %c0_3], %1 {strides = array<i32>} : memref<24x128xbf16, #tpu.memory_space<vmem>>, vector<16x128xbf16>,
    %c0_4 = arith.constant 0 : index
    %c0_5 = arith.constant 0 : index
    %c0_6 = arith.constant 0 : index
    %c0_7 = arith.constant 0 : index
    %3 = vector.load %arg3[%c0_4, %c0_5, %c0_6, %c0_7] : memref<1x1x8x128xbf16, #tpu.memory_space<vmem>>, vector<1x1x8x128xbf16>
    %4 = vector.shape_cast %3 : vector<1x1x8x128xbf16> to vector<8x128xbf16>
    %c16 = arith.constant 16 : index
    %c0_8 = arith.constant 0 : index
    %5 = vector.load %arg11[%c16, %c0_8] : memref<24x128xbf16, #tpu.memory_space<vmem>>, vector<8x128xbf16>
    tpu.vector_store %arg11[%c16, %c0_8], %4 {strides = array<i32>} : memref<24x128xbf16, #tpu.memory_space<vmem>>, vector<8x128xbf16>,
    %c0_9 = arith.constant 0 : index
    %c0_10 = arith.constant 0 : index
    %6 = vector.load %arg11[%c0_9, %c0_10] : memref<24x128xbf16, #tpu.memory_space<vmem>>, vector<18x128xbf16>
    %c0_11 = arith.constant 0 : index
    %c0_12 = arith.constant 0 : index
    %7 = vector.load %arg12[%c0_11, %c0_12] : memref<18x384xbf16, #tpu.memory_space<vmem>>, vector<18x128xbf16>
    tpu.vector_store %arg12[%c0_11, %c0_12], %6 {strides = array<i32>} : memref<18x384xbf16, #tpu.memory_space<vmem>>, vector<18x128xbf16>,
    %c1 = arith.constant 1 : index
    %c0_13 = arith.constant 0 : index
    %8 = vector.load %arg11[%c1, %c0_13] : memref<24x128xbf16, #tpu.memory_space<vmem>>, vector<18x128xbf16>
    %c0_14 = arith.constant 0 : index
    %c128 = arith.constant 128 : index
    %9 = vector.load %arg12[%c0_14, %c128] : memref<18x384xbf16, #tpu.memory_space<vmem>>, vector<18x128xbf16>
    tpu.vector_store %arg12[%c0_14, %c128], %8 {strides = array<i32>} : memref<18x384xbf16, #tpu.memory_space<vmem>>, vector<18x128xbf16>,
    %c2 = arith.constant 2 : index
    %c0_15 = arith.constant 0 : index
    %10 = vector.load %arg11[%c2, %c0_15] : memref<24x128xbf16, #tpu.memory_space<vmem>>, vector<18x128xbf16>
    %c0_16 = arith.constant 0 : index
    %c256 = arith.constant 256 : index
    %11 = vector.load %arg12[%c0_16, %c256] : memref<18x384xbf16, #tpu.memory_space<vmem>>, vector<18x128xbf16>
    tpu.vector_store %arg12[%c0_16, %c256], %10 {strides = array<i32>} : memref<18x384xbf16, #tpu.memory_space<vmem>>, vector<18x128xbf16>,
    %c0_17 = arith.constant 0 : index
    %c0_18 = arith.constant 0 : index
    %12 = vector.load %arg12[%c0_17, %c0_18] : memref<18x384xbf16, #tpu.memory_space<vmem>>, vector<18x384xbf16>
    %c0_19 = arith.constant 0 : index
    %c0_20 = arith.constant 0 : index
    %13 = vector.load %arg4[%c0_19, %c0_20] : memref<384x128xbf16, #tpu.memory_space<vmem>>, vector<384x128xbf16>
    %cst = arith.constant dense<0.000000e+00> : vector<18x128xf32>
    %14 = tpu.matmul %12, %13, %cst {dimension_numbers = #tpu.dot_dimension_numbers<[1], [0], [0], [1], [0, 0, 1, 1], [], []>} : vector<18x384xbf16>, vector<384x128xbf16>, vector<18x128xf32> -> vector<18x128xf32>
    %c0_21 = arith.constant 0 : index
    %c0_22 = arith.constant 0 : index
    %15 = vector.load %arg6[%c0_21, %c0_22] : memref<1x128xf32, #tpu.memory_space<vmem>>, vector<1x128xf32>
    %16 = vector.broadcast %15 : vector<1x128xf32> to vector<18x128xf32>
    %17 = arith.addf %14, %16 : vector<18x128xf32>
    %cst_23 = arith.constant 0.000000e+00 : f32
    %18 = vector.broadcast %cst_23 : f32 to vector<18x128xf32>
    %19 = arith.maximumf %17, %18 : vector<18x128xf32>
    %20 = tpu.iota {dimensions = array<i32: 0>} : vector<18x1xi32>
    %c16_i32 = arith.constant 16 : i32
    %21 = arith.muli %arg1, %c16_i32 : i32
    %c1_i32 = arith.constant 1 : i32
    %22 = arith.subi %21, %c1_i32 : i32
    %23 = vector.broadcast %22 : i32 to vector<18x1xi32>
    %24 = arith.addi %23, %20 : vector<18x1xi32>
    %c0_i32 = arith.constant 0 : i32
    %25 = vector.broadcast %c0_i32 : i32 to vector<18x1xi32>
    %26 = arith.cmpi sge, %24, %25 : vector<18x1xi32>
    %c16_i32_24 = arith.constant 16 : i32
    %27 = vector.broadcast %c16_i32_24 : i32 to vector<18x1xi32>
    %28 = arith.cmpi slt, %24, %27 : vector<18x1xi32>
    %29 = arith.andi %26, %28 : vector<18x1xi1>
    %cst_25 = arith.constant 0.000000e+00 : f32
    %30 = vector.shape_cast %29 : vector<18x1xi1> to vector<18x1xi1>
    %31 = vector.broadcast %30 : vector<18x1xi1> to vector<18x128xi1>
    %32 = vector.broadcast %cst_25 : f32 to vector<18x128xf32>
    %33 = arith.select %31, %19, %32 : vector<18x128xi1>, vector<18x128xf32>
    %34 = arith.truncf %33 : vector<18x128xf32> to vector<18x128xbf16>
    %35 = vector.extract_strided_slice %34 {offsets = [0, 0], sizes = [16, 128], strides = [1, 1]} : vector<18x128xbf16> to vector<16x128xbf16>
    %c0_26 = arith.constant 0 : index
    %c0_27 = arith.constant 0 : index
    %36 = vector.load %arg13[%c0_26, %c0_27] : memref<16x384xbf16, #tpu.memory_space<vmem>>, vector<16x128xbf16>
    tpu.vector_store %arg13[%c0_26, %c0_27], %35 {strides = array<i32>} : memref<16x384xbf16, #tpu.memory_space<vmem>>, vector<16x128xbf16>,
    %37 = vector.extract_strided_slice %34 {offsets = [1, 0], sizes = [16, 128], strides = [1, 1]} : vector<18x128xbf16> to vector<16x128xbf16>
    %c0_28 = arith.constant 0 : index
    %c128_29 = arith.constant 128 : index
    %38 = vector.load %arg13[%c0_28, %c128_29] : memref<16x384xbf16, #tpu.memory_space<vmem>>, vector<16x128xbf16>
    tpu.vector_store %arg13[%c0_28, %c128_29], %37 {strides = array<i32>} : memref<16x384xbf16, #tpu.memory_space<vmem>>, vector<16x128xbf16>,
    %39 = vector.extract_strided_slice %34 {offsets = [2, 0], sizes = [16, 128], strides = [1, 1]} : vector<18x128xbf16> to vector<16x128xbf16>
    %c0_30 = arith.constant 0 : index
    %c256_31 = arith.constant 256 : index
    %40 = vector.load %arg13[%c0_30, %c256_31] : memref<16x384xbf16, #tpu.memory_space<vmem>>, vector<16x128xbf16>
    tpu.vector_store %arg13[%c0_30, %c256_31], %39 {strides = array<i32>} : memref<16x384xbf16, #tpu.memory_space<vmem>>, vector<16x128xbf16>,
    %c0_32 = arith.constant 0 : index
    %c0_33 = arith.constant 0 : index
    %41 = vector.load %arg13[%c0_32, %c0_33] : memref<16x384xbf16, #tpu.memory_space<vmem>>, vector<16x384xbf16>
    %c0_34 = arith.constant 0 : index
    %c0_35 = arith.constant 0 : index
    %42 = vector.load %arg5[%c0_34, %c0_35] : memref<384x128xbf16, #tpu.memory_space<vmem>>, vector<384x128xbf16>
    %cst_36 = arith.constant dense<0.000000e+00> : vector<16x128xf32>
    %43 = tpu.matmul %41, %42, %cst_36 {dimension_numbers = #tpu.dot_dimension_numbers<[1], [0], [0], [1], [0, 0, 1, 1], [], []>} : vector<16x384xbf16>, vector<384x128xbf16>, vector<16x128xf32> -> vector<16x128xf32>
    %c0_37 = arith.constant 0 : index
    %c0_38 = arith.constant 0 : index
    %44 = vector.load %arg7[%c0_37, %c0_38] : memref<1x128xf32, #tpu.memory_space<vmem>>, vector<1x128xf32>
    %45 = vector.broadcast %44 : vector<1x128xf32> to vector<16x128xf32>
    %46 = arith.addf %43, %45 : vector<16x128xf32>
    %c2_39 = arith.constant 2 : index
    %c0_40 = arith.constant 0 : index
    %47 = vector.load %arg11[%c2_39, %c0_40] : memref<24x128xbf16, #tpu.memory_space<vmem>>, vector<16x128xbf16>
    %c0_41 = arith.constant 0 : index
    %c0_42 = arith.constant 0 : index
    %48 = vector.load %arg8[%c0_41, %c0_42] : memref<128x128xbf16, #tpu.memory_space<vmem>>, vector<128x128xbf16>
    %cst_43 = arith.constant dense<0.000000e+00> : vector<16x128xf32>
    %49 = tpu.matmul %47, %48, %cst_43 {dimension_numbers = #tpu.dot_dimension_numbers<[1], [0], [0], [1], [0, 0, 1, 1], [], []>} : vector<16x128xbf16>, vector<128x128xbf16>, vector<16x128xf32> -> vector<16x128xf32>
    %c0_44 = arith.constant 0 : index
    %c0_45 = arith.constant 0 : index
    %50 = vector.load %arg9[%c0_44, %c0_45] : memref<1x128xf32, #tpu.memory_space<vmem>>, vector<1x128xf32>
    %51 = vector.broadcast %50 : vector<1x128xf32> to vector<16x128xf32>
    %52 = arith.addf %49, %51 : vector<16x128xf32>
    %53 = arith.addf %46, %52 : vector<16x128xf32>
    %cst_46 = arith.constant 0.000000e+00 : f32
    %54 = vector.broadcast %cst_46 : f32 to vector<16x128xf32>
    %55 = arith.maximumf %53, %54 : vector<16x128xf32>
    %c0_47 = arith.constant 0 : index
    %c0_48 = arith.constant 0 : index
    %c0_49 = arith.constant 0 : index
    %56 = vector.load %arg10[%c0_47, %c0_48, %c0_49] : memref<1x16x128xf32, #tpu.memory_space<vmem>>, vector<1x16x128xf32>
    %57 = vector.shape_cast %56 : vector<1x16x128xf32> to vector<16x128xf32>
    %58 = vector.shape_cast %55 : vector<16x128xf32> to vector<1x16x128xf32>
    tpu.vector_store %arg10[%c0_47, %c0_48, %c0_49], %58 {strides = array<i32>} : memref<1x16x128xf32, #tpu.memory_space<vmem>>, vector<1x16x128xf32>,
    return
  }
  func.func @transform_0(%arg0: i32, %arg1: i32) -> (i32, i32, i32) {
    %c0_i32 = arith.constant 0 : i32
    %c0_i32_0 = arith.constant 0 : i32
    return %arg0, %arg1, %c0_i32 : i32, i32, i32
  }
  func.func @transform_1(%arg0: i32, %arg1: i32) -> (i32, i32, i32, i32) {
    %c0_i32 = arith.constant 0 : i32
    %c0_i32_0 = arith.constant 0 : i32
    %c0_i32_1 = arith.constant 0 : i32
    return %arg0, %arg1, %c0_i32, %c0_i32_0 : i32, i32, i32, i32
  }
  func.func @transform_2(%arg0: i32, %arg1: i32) -> (i32, i32) {
    %c0_i32 = arith.constant 0 : i32
    %c0_i32_0 = arith.constant 0 : i32
    %c0_i32_1 = arith.constant 0 : i32
    return %c0_i32, %c0_i32_0 : i32, i32
  }
  func.func @transform_3(%arg0: i32, %arg1: i32) -> (i32, i32) {
    %c0_i32 = arith.constant 0 : i32
    %c0_i32_0 = arith.constant 0 : i32
    %c0_i32_1 = arith.constant 0 : i32
    return %c0_i32, %c0_i32_0 : i32, i32
  }
  func.func @transform_4(%arg0: i32, %arg1: i32) -> (i32, i32) {
    %c0_i32 = arith.constant 0 : i32
    %c0_i32_0 = arith.constant 0 : i32
    %c0_i32_1 = arith.constant 0 : i32
    return %c0_i32, %c0_i32_0 : i32, i32
  }
  func.func @transform_5(%arg0: i32, %arg1: i32) -> (i32, i32) {
    %c0_i32 = arith.constant 0 : i32
    %c0_i32_0 = arith.constant 0 : i32
    %c0_i32_1 = arith.constant 0 : i32
    return %c0_i32, %c0_i32_0 : i32, i32
  }
  func.func @transform_6(%arg0: i32, %arg1: i32) -> (i32, i32) {
    %c0_i32 = arith.constant 0 : i32
    %c0_i32_0 = arith.constant 0 : i32
    %c0_i32_1 = arith.constant 0 : i32
    return %c0_i32, %c0_i32_0 : i32, i32
  }
  func.func @transform_7(%arg0: i32, %arg1: i32) -> (i32, i32) {
    %c0_i32 = arith.constant 0 : i32
    %c0_i32_0 = arith.constant 0 : i32
    %c0_i32_1 = arith.constant 0 : i32
    return %c0_i32, %c0_i32_0 : i32, i32
  }
  func.func @transform_8(%arg0: i32, %arg1: i32) -> (i32, i32, i32) {
    %c0_i32 = arith.constant 0 : i32
    %c0_i32_0 = arith.constant 0 : i32
    return %arg0, %arg1, %c0_i32 : i32, i32, i32
  }
}

</mosaic_0001>

<llo_original>
// kernel: residual_conv1d_block.1
$region0: #{residual_conv1d_block.1}
  #allocation0 [shape = 'u32[]', space=smem, size = 0x4, offset = 0x4, fixed_abs, tag = 'smem constant byte address 0x4 - core index']
  #allocation1 [shape = 'u32[144,128]{1,0:T(1,128)}', space=vmem, size = 0x12000, scoped, tag = 'internal scratch']
  #allocation2 [shape = 'bf16[24,128]{1,0:T(8,128)(2,1)}', space=vmem, size = 0x1800, scoped, tag = 'scratch operand']
  #allocation3 [shape = 'bf16[18,384]{1,0:T(8,128)(2,1)}', space=vmem, size = 0x4800, scoped, tag = 'scratch operand']
  #allocation4 [shape = 'bf16[16,384]{1,0:T(16,128)(2,1)}', space=vmem, size = 0x3000, scoped, tag = 'scratch operand']
  %s0 = inlined_call_operand.vmem [shape: bf16[2,24,128], index: 0, kind: input, shape index: {}]
  %s1 = inlined_call_operand.vmem [shape: bf16[2,1,8,128], index: 1, kind: input, shape index: {}]
  %s2 = inlined_call_operand.vmem [shape: bf16[384,128], index: 2, kind: input, shape index: {}]
  %s3 = inlined_call_operand.vmem [shape: bf16[384,128], index: 3, kind: input, shape index: {}]
  %s4 = inlined_call_operand.vmem [shape: f32[1,128], index: 4, kind: input, shape index: {}]
  %s5 = inlined_call_operand.vmem [shape: f32[1,128], index: 5, kind: input, shape index: {}]
  %s6 = inlined_call_operand.vmem [shape: bf16[128,128], index: 6, kind: input, shape index: {}]
  %s7 = inlined_call_operand.vmem [shape: f32[1,128], index: 7, kind: input, shape index: {}]
  %s8 = inlined_call_operand.vmem [shape: f32[2,16,128], index: 8, kind: output, shape index: {}]
  %s9 = sld [smem:[#allocation0]]
  $region65: #{residual_conv1d_block.1} parent=0
    _
  %s11 = ssub.s32 1, %s9
  %s12 = scalar_select 0, %s11, %s9
  loop: start=0, step=1, limit=4
  $region2: #{residual_conv1d_block.1} parent=0 // loop_pre_header
    _
  $region3: #{residual_conv1d_block.1} parent=0 // loop_header
    %s14 = sphi 0, %s18
    %p15 = scmp.ge.s32.totalorder %s14, 4
    %s21 = sphi 0, %s33
    %s22 = sphi 0, %s29
    %s23 = sphi 0, %s21
    %s24 = sphi 0, %s22
    %s25 = sphi 0, %s23
    %s26 = sphi 0, %s24
    %s38 = sphi 0, %s40
    %s41 = sphi 0, %s38
    %s42 = sphi 0, %s41
    %s58 = sphi 0, %s42
    %s66 = sphi 0, %s68
    %s69 = sphi 0, %s66
    %s70 = sphi 0, %s69
    %s86 = sphi 0, %s70
    %s90 = sphi 0, %s90
    %s92 = sphi 0, %s90
    %s93 = sphi 0, %s92
    %s107 = sphi 0, %s93
    %s111 = sphi 0, %s111
    %s113 = sphi 0, %s111
    %s114 = sphi 0, %s113
    %s128 = sphi 0, %s114
    %s132 = sphi 0, %s132
    %s134 = sphi 0, %s132
    %s135 = sphi 0, %s134
    %s149 = sphi 0, %s135
    %s153 = sphi 0, %s153
    %s155 = sphi 0, %s153
    %s156 = sphi 0, %s155
    %s170 = sphi 0, %s156
    %s174 = sphi 0, %s174
    %s176 = sphi 0, %s174
    %s177 = sphi 0, %s176
    %s191 = sphi 0, %s177
    %s195 = sphi 0, %s195
    %s197 = sphi 0, %s195
    %s198 = sphi 0, %s197
    %s212 = sphi 0, %s198
    %s220 = sphi 0, %s222
    %s223 = sphi 0, %s220
    %s224 = sphi 0, %s223
    %s240 = sphi 0, %s224
  $region4: #{residual_conv1d_block.1} parent=0 // loop_header_branch
    %17 = sbr.rel (%p15) target = $region8
  $region5: #{residual_conv1d_block.1} parent=0 // loop_body
    %s19 = ssub.s32 %s14, 1
    %s20 = ssub.s32 %s14, 2
    %s27 = sadd.s32 1, %s22
    %p28 = scmp.ge.s32.totalorder %s27, 1
    %s29 = scalar_select %p28, 0, %s27
    %s30 = sadd.s32 1, %s21
    %s31 = scalar_select %p28, %s30, %s21
    %p32 = scmp.ge.s32.totalorder %s31, 2
    %s33 = scalar_select %p32, 0, %s31
    %s34 = ssub.s32 %s21, %s33
    %s35 = ssub.s32 %s22, %s29
    %s36 = sor.u32 %s34, %s35
    %p37 = scmp.eq.s32.totalorder %s36, 0
    %s39 = sadd.s32 %s38, 1
    %s40 = scalar_select %p37, %s38, %s39
    %p43 = pneg %p37
    %p44 = scmp.eq.s32.totalorder %s14, 1
    %p45 = por %p43, %p44
    %p46 = scmp.ne.s32.totalorder %s38, %s41
    %p47 = scmp.eq.s32.totalorder %s14, 0
    %p48 = por %p46, %p47
    %p49 = scmp.ne.s32.totalorder %s38, %s41
    %p50 = scmp.eq.s32.totalorder %s19, 1
    %p51 = por %p49, %p50
    %p52 = scmp.ne.s32.totalorder %s41, %s42
    %p53 = scmp.eq.s32.totalorder %s19, 0
    %p54 = por %p52, %p53
    %p55 = scmp.ne.s32.totalorder %s41, %s42
    %p56 = scmp.eq.s32.totalorder %s20, 1
    %p57 = por %p55, %p56
    %p59 = scmp.ne.s32.totalorder %s42, %s58
    %p60 = scmp.eq.s32.totalorder %s20, 0
    %p61 = por %p59, %p60
    %s62 = ssub.s32 %s21, %s33
    %s63 = ssub.s32 %s22, %s29
    %s64 = sor.u32 %s62, %s63
    %p65 = scmp.eq.s32.totalorder %s64, 0
    %s67 = sadd.s32 %s66, 1
    %s68 = scalar_select %p65, %s66, %s67
    %p71 = pneg %p65
    %p72 = scmp.eq.s32.totalorder %s14, 1
    %p73 = por %p71, %p72
    %p74 = scmp.ne.s32.totalorder %s66, %s69
    %p75 = scmp.eq.s32.totalorder %s14, 0
    %p76 = por %p74, %p75
    %p77 = scmp.ne.s32.totalorder %s66, %s69
    %p78 = scmp.eq.s32.totalorder %s19, 1
    %p79 = por %p77, %p78
    %p80 = scmp.ne.s32.totalorder %s69, %s70
    %p81 = scmp.eq.s32.totalorder %s19, 0
    %p82 = por %p80, %p81
    %p83 = scmp.ne.s32.totalorder %s69, %s70
    %p84 = scmp.eq.s32.totalorder %s20, 1
    %p85 = por %p83, %p84
    %p87 = scmp.ne.s32.totalorder %s70, %s86
    %p88 = scmp.eq.s32.totalorder %s20, 0
    %p89 = por %p87, %p88
    %s91 = sadd.s32 %s90, 1
    %p94 = scmp.eq.s32.totalorder %s14, 1
    %p95 = scmp.ne.s32.totalorder %s90, %s92
    %p96 = scmp.eq.s32.totalorder %s14, 0
    %p97 = por %p95, %p96
    %p98 = scmp.ne.s32.totalorder %s90, %s92
    %p99 = scmp.eq.s32.totalorder %s19, 1
    %p100 = por %p98, %p99
    %p101 = scmp.ne.s32.totalorder %s92, %s93
    %p102 = scmp.eq.s32.totalorder %s19, 0
    %p103 = por %p101, %p102
    %p104 = scmp.ne.s32.totalorder %s92, %s93
    %p105 = scmp.eq.s32.totalorder %s20, 1
    %p106 = por %p104, %p105
    %p108 = scmp.ne.s32.totalorder %s93, %s107
    %p109 = scmp.eq.s32.totalorder %s20, 0
    %p110 = por %p108, %p109
    %s112 = sadd.s32 %s111, 1
    %p115 = scmp.eq.s32.totalorder %s14, 1
    %p116 = scmp.ne.s32.totalorder %s111, %s113
    %p117 = scmp.eq.s32.totalorder %s14, 0
    %p118 = por %p116, %p117
    %p119 = scmp.ne.s32.totalorder %s111, %s113
    %p120 = scmp.eq.s32.totalorder %s19, 1
    %p121 = por %p119, %p120
    %p122 = scmp.ne.s32.totalorder %s113, %s114
    %p123 = scmp.eq.s32.totalorder %s19, 0
    %p124 = por %p122, %p123
    %p125 = scmp.ne.s32.totalorder %s113, %s114
    %p126 = scmp.eq.s32.totalorder %s20, 1
    %p127 = por %p125, %p126
    %p129 = scmp.ne.s32.totalorder %s114, %s128
    %p130 = scmp.eq.s32.totalorder %s20, 0
    %p131 = por %p129, %p130
    %s133 = sadd.s32 %s132, 1
    %p136 = scmp.eq.s32.totalorder %s14, 1
    %p137 = scmp.ne.s32.totalorder %s132, %s134
    %p138 = scmp.eq.s32.totalorder %s14, 0
    %p139 = por %p137, %p138
    %p140 = scmp.ne.s32.totalorder %s132, %s134
    %p141 = scmp.eq.s32.totalorder %s19, 1
    %p142 = por %p140, %p141
    %p143 = scmp.ne.s32.totalorder %s134, %s135
    %p144 = scmp.eq.s32.totalorder %s19, 0
    %p145 = por %p143, %p144
    %p146 = scmp.ne.s32.totalorder %s134, %s135
    %p147 = scmp.eq.s32.totalorder %s20, 1
    %p148 = por %p146, %p147
    %p150 = scmp.ne.s32.totalorder %s135, %s149
    %p151 = scmp.eq.s32.totalorder %s20, 0
    %p152 = por %p150, %p151
    %s154 = sadd.s32 %s153, 1
    %p157 = scmp.eq.s32.totalorder %s14, 1
    %p158 = scmp.ne.s32.totalorder %s153, %s155
    %p159 = scmp.eq.s32.totalorder %s14, 0
    %p160 = por %p158, %p159
    %p161 = scmp.ne.s32.totalorder %s153, %s155
    %p162 = scmp.eq.s32.totalorder %s19, 1
    %p163 = por %p161, %p162
    %p164 = scmp.ne.s32.totalorder %s155, %s156
    %p165 = scmp.eq.s32.totalorder %s19, 0
    %p166 = por %p164, %p165
    %p167 = scmp.ne.s32.totalorder %s155, %s156
    %p168 = scmp.eq.s32.totalorder %s20, 1
    %p169 = por %p167, %p168
    %p171 = scmp.ne.s32.totalorder %s156, %s170
    %p172 = scmp.eq.s32.totalorder %s20, 0
    %p173 = por %p171, %p172
    %s175 = sadd.s32 %s174, 1
    %p178 = scmp.eq.s32.totalorder %s14, 1
    %p179 = scmp.ne.s32.totalorder %s174, %s176
    %p180 = scmp.eq.s32.totalorder %s14, 0
    %p181 = por %p179, %p180
    %p182 = scmp.ne.s32.totalorder %s174, %s176
    %p183 = scmp.eq.s32.totalorder %s19, 1
    %p184 = por %p182, %p183
    %p185 = scmp.ne.s32.totalorder %s176, %s177
    %p186 = scmp.eq.s32.totalorder %s19, 0
    %p187 = por %p185, %p186
    %p188 = scmp.ne.s32.totalorder %s176, %s177
    %p189 = scmp.eq.s32.totalorder %s20, 1
    %p190 = por %p188, %p189
    %p192 = scmp.ne.s32.totalorder %s177, %s191
    %p193 = scmp.eq.s32.totalorder %s20, 0
    %p194 = por %p192, %p193
    %s196 = sadd.s32 %s195, 1
    %p199 = scmp.eq.s32.totalorder %s14, 1
    %p200 = scmp.ne.s32.totalorder %s195, %s197
    %p201 = scmp.eq.s32.totalorder %s14, 0
    %p202 = por %p200, %p201
    %p203 = scmp.ne.s32.totalorder %s195, %s197
    %p204 = scmp.eq.s32.totalorder %s19, 1
    %p205 = por %p203, %p204
    %p206 = scmp.ne.s32.totalorder %s197, %s198
    %p207 = scmp.eq.s32.totalorder %s19, 0
    %p208 = por %p206, %p207
    %p209 = scmp.ne.s32.totalorder %s197, %s198
    %p210 = scmp.eq.s32.totalorder %s20, 1
    %p211 = por %p209, %p210
    %p213 = scmp.ne.s32.totalorder %s198, %s212
    %p214 = scmp.eq.s32.totalorder %s20, 0
    %p215 = por %p213, %p214
    %s216 = ssub.s32 %s21, %s33
    %s217 = ssub.s32 %s22, %s29
    %s218 = sor.u32 %s216, %s217
    %p219 = scmp.eq.s32.totalorder %s218, 0
    %s221 = sadd.s32 %s220, 1
    %s222 = scalar_select %p219, %s220, %s221
    %p225 = pneg %p219
    %p226 = scmp.eq.s32.totalorder %s14, 1
    %p227 = por %p225, %p226
    %p228 = scmp.ne.s32.totalorder %s220, %s223
    %p229 = scmp.eq.s32.totalorder %s14, 0
    %p230 = por %p228, %p229
    %p231 = scmp.ne.s32.totalorder %s220, %s223
    %p232 = scmp.eq.s32.totalorder %s19, 1
    %p233 = por %p231, %p232
    %p234 = scmp.ne.s32.totalorder %s223, %s224
    %p235 = scmp.eq.s32.totalorder %s19, 0
    %p236 = por %p234, %p235
    %p237 = scmp.ne.s32.totalorder %s223, %s224
    %p238 = scmp.eq.s32.totalorder %s20, 1
    %p239 = por %p237, %p238
    %p241 = scmp.ne.s32.totalorder %s224, %s240
    %p242 = scmp.eq.s32.totalorder %s20, 0
    %p243 = por %p241, %p242
    %p244 = scmp.le.s32.totalorder 1, %s14
    %p245 = scmp.lt.s32.totalorder %s14, 3
    %p246 = pnand %p244, %p245
    %p247 = pneg %p246
    // Predicated region
    $region9: #{residual_conv1d_block.1} parent=5 // pred_check
      _
    $region10: #{residual_conv1d_block.1} parent=5 // pred_check_branch
      %249 = sbr.rel (%p246) target = $region12
    $region11: #{residual_conv1d_block.1} parent=5 // pred_region
      %s250 = ssub.s32 %s14, 1
      // Predicated region
      $region13: #{residual_conv1d_block.1} parent=11 // pred_check
        %p251 = pneg %p103
      $region14: #{residual_conv1d_block.1} parent=11 // pred_check_branch
        %253 = sbr.rel (%p251) target = $region16
      $region15: #{residual_conv1d_block.1} parent=11 // pred_region
        _
      $region16: #{residual_conv1d_block.1} parent=11 // pred_fallthru
        _
      // Predicated region
      $region17: #{residual_conv1d_block.1} parent=11 // pred_check
        %p254 = pneg %p124
      $region18: #{residual_conv1d_block.1} parent=11 // pred_check_branch
        %256 = sbr.rel (%p254) target = $region20
      $region19: #{residual_conv1d_block.1} parent=11 // pred_region
        _
      $region20: #{residual_conv1d_block.1} parent=11 // pred_fallthru
        _
      // Predicated region
      $region21: #{residual_conv1d_block.1} parent=11 // pred_check
        %p257 = pneg %p145
      $region22: #{residual_conv1d_block.1} parent=11 // pred_check_branch
        %259 = sbr.rel (%p257) target = $region24
      $region23: #{residual_conv1d_block.1} parent=11 // pred_region
        _
      $region24: #{residual_conv1d_block.1} parent=11 // pred_fallthru
        _
      // Predicated region
      $region25: #{residual_conv1d_block.1} parent=11 // pred_check
        %p260 = pneg %p166
      $region26: #{residual_conv1d_block.1} parent=11 // pred_check_branch
        %262 = sbr.rel (%p260) target = $region28
      $region27: #{residual_conv1d_block.1} parent=11 // pred_region
        _
      $region28: #{residual_conv1d_block.1} parent=11 // pred_fallthru
        _
      // Predicated region
      $region29: #{residual_conv1d_block.1} parent=11 // pred_check
        %p263 = pneg %p187
      $region30: #{residual_conv1d_block.1} parent=11 // pred_check_branch
        %265 = sbr.rel (%p263) target = $region32
      $region31: #{residual_conv1d_block.1} parent=11 // pred_region
        _
      $region32: #{residual_conv1d_block.1} parent=11 // pred_fallthru
        _
      // Predicated region
      $region33: #{residual_conv1d_block.1} parent=11 // pred_check
        %p266 = pneg %p208
      $region34: #{residual_conv1d_block.1} parent=11 // pred_check_branch
        %268 = sbr.rel (%p266) target = $region36
      $region35: #{residual_conv1d_block.1} parent=11 // pred_region
        _
      $region36: #{residual_conv1d_block.1} parent=11 // pred_fallthru
        _
    $region12: #{residual_conv1d_block.1} parent=5 // pred_fallthru
      _
    %p269 = scmp.lt.s32.totalorder %s14, 2
    // Predicated region
    $region37: #{residual_conv1d_block.1} parent=5 // pred_check
      %p270 = pneg %p269
    $region38: #{residual_conv1d_block.1} parent=5 // pred_check_branch
      %272 = sbr.rel (%p270) target = $region40
    $region39: #{residual_conv1d_block.1} parent=5 // pred_region
      // Predicated region
      $region41: #{residual_conv1d_block.1} parent=39 // pred_check
        %p273 = pneg %p48
      $region42: #{residual_conv1d_block.1} parent=39 // pred_check_branch
        %275 = sbr.rel (%p273) target = $region44
      $region43: #{residual_conv1d_block.1} parent=39 // pred_region
        %s276 = smul.u32 2, %s22
        %s277 = ssub.s32 3, %s276
        %p278 = scmp.lt.s32.totalorder %s277, 2
        %s279 = scalar_select %p278, %s277, 2
        %s280 = smul.u32 64, %s279
        %p281 = scmp.lt.s32.totalorder %s21, 1
        %s282 = scalar_select %p281, %s21, 1
        %p283 = scmp.lt.s32.totalorder %s276, 2
        %s284 = scalar_select %p283, %s276, 2
        %s285 = smul.addr %s282, 3
        %s286 = sadd.s32 %s284, %s285
        %s287 = smul.addr %s286, 4
        %s288 = scalar_lea.vmem %s0, %s287
        %s289 = smul.u32 2, %s22
        %s290 = ssub.s32 3, %s289
        %p291 = scmp.lt.s32.totalorder %s290, 2
        %s292 = scalar_select %p291, %s290, 2
        %s293 = smul.u32 64, %s292
      $region44: #{residual_conv1d_block.1} parent=39 // pred_fallthru
        _
      // Predicated region
      $region45: #{residual_conv1d_block.1} parent=39 // pred_check
        %p294 = pneg %p76
      $region46: #{residual_conv1d_block.1} parent=39 // pred_check_branch
        %296 = sbr.rel (%p294) target = $region48
      $region47: #{residual_conv1d_block.1} parent=39 // pred_region
        %p297 = scmp.lt.s32.totalorder %s21, 1
        %s298 = scalar_select %p297, %s21, 1
        %p299 = scmp.lt.s32.totalorder %s22, 0
        %s300 = scalar_select %p299, %s22, 0
        %s301 = sadd.s32 %s300, %s298
        %s302 = smul.addr %s301, 4
        %s303 = scalar_lea.vmem %s1, %s302
      $region48: #{residual_conv1d_block.1} parent=39 // pred_fallthru
        _
    $region40: #{residual_conv1d_block.1} parent=5 // pred_fallthru
      _
    %p304 = scmp.le.s32.totalorder 1, %s14
    %p305 = scmp.lt.s32.totalorder %s14, 3
    %p306 = pnand %p304, %p305
    %p307 = pneg %p306
    // Predicated region
    $region49: #{residual_conv1d_block.1} parent=5 // pred_check
      _
    $region50: #{residual_conv1d_block.1} parent=5 // pred_check_branch
      %309 = sbr.rel (%p306) target = $region52
    $region51: #{residual_conv1d_block.1} parent=5 // pred_region
      %s310 = ssub.s32 %s14, 1
      %s311 = smul.u32 2, %s24
      %s312 = ssub.s32 3, %s311
      %p313 = scmp.lt.s32.totalorder %s312, 2
      %s314 = scalar_select %p313, %s312, 2
      %s315 = smul.u32 64, %s314
      %p316 = scmp.lt.s32.totalorder %s23, 1
      %s317 = scalar_select %p316, %s23, 1
      %p318 = scmp.lt.s32.totalorder %s311, 2
      %s319 = scalar_select %p318, %s311, 2
      %s320 = smul.addr %s317, 3
      %s321 = sadd.s32 %s319, %s320
      %s322 = smul.addr %s321, 4
      %s323 = scalar_lea.vmem %s0, %s322
      %p324 = pneg %p54
      %p325 = pneg %p51
      %p326 = scmp.lt.s32.totalorder %s23, 1
      %s327 = scalar_select %p326, %s23, 1
      %p328 = scmp.lt.s32.totalorder %s24, 0
      %s329 = scalar_select %p328, %s24, 0
      %s330 = sadd.s32 %s329, %s327
      %s331 = smul.addr %s330, 4
      %s332 = scalar_lea.vmem %s1, %s331
      %p333 = pneg %p82
      %p334 = pneg %p79
      %p335 = pneg %p103
      %p336 = pneg %p100
      %p337 = pneg %p124
      %p338 = pneg %p121
      %p339 = pneg %p145
      %p340 = pneg %p142
      %p341 = pneg %p166
      %p342 = pneg %p163
      %p343 = pneg %p187
      %p344 = pneg %p184
      %p345 = pneg %p208
      %p346 = pneg %p205
      %p347 = pneg %p236
      %p348 = pneg %p233
      %s349 = smul.u32 2, %s24
      %p350 = scmp.lt.s32.totalorder %s23, 1
      %s351 = scalar_select %p350, %s23, 1
      %p352 = scmp.lt.s32.totalorder %s349, 1
      %s353 = scalar_select %p352, %s349, 1
      %s354 = smul.addr %s351, 2
      %s355 = sadd.s32 %s353, %s354
      %s356 = smul.addr %s355, 8
      %s357 = scalar_lea.vmem %s8, %s356
      %s358 = smul.u32 2, %s24
      %s359 = ssub.s32 3, %s358
      %p360 = scmp.lt.s32.totalorder %s359, 2
      %s361 = scalar_select %p360, %s359, 2
      %s362 = smul.u32 64, %s361
      %p363 = scmp.lt.s32.totalorder %s23, 1
      %s364 = scalar_select %p363, %s23, 1
      %p365 = scmp.lt.s32.totalorder %s358, 2
      %s366 = scalar_select %p365, %s358, 2
      %s367 = smul.addr %s364, 3
      %s368 = sadd.s32 %s366, %s367
      %s369 = smul.addr %s368, 4
      %s370 = scalar_lea.vmem %s0, %s369
      %s371 = smul.u32 2, %s24
      %s372 = ssub.s32 3, %s371
      %p373 = scmp.lt.s32.totalorder %s372, 2
      %s374 = scalar_select %p373, %s372, 2
      %s375 = smul.u32 64, %s374
      %p376 = scmp.lt.s32.totalorder %s23, 1
      %s377 = scalar_select %p376, %s23, 1
      %p378 = scmp.lt.s32.totalorder %s24, 0
      %s379 = scalar_select %p378, %s24, 0
      %s380 = sadd.s32 %s379, %s377
      %s381 = smul.addr %s380, 4
      %s382 = scalar_lea.vmem %s1, %s381
      %s383 = smul.u32 2, %s24
      %p384 = scmp.lt.s32.totalorder %s23, 1
      %s385 = scalar_select %p384, %s23, 1
      %p386 = scmp.lt.s32.totalorder %s383, 1
      %s387 = scalar_select %p386, %s383, 1
      %s388 = smul.addr %s385, 2
      %s389 = sadd.s32 %s387, %s388
      %s390 = smul.addr %s389, 8
      %s391 = scalar_lea.vmem %s8, %s390
      %s392 = smul.u32 2, %s24
      %v394 = vld [vmem:[%s370] sm:$0xf]
      %v395 = vld [vmem:[%s370 + $0x4] sm:$0xf]
      %396 = vst [vmem:[#allocation2] sm:$0xf] %v394
      %397 = vst [vmem:[#allocation2 + $0x4] sm:$0xf] %v395
      %v398 = vld [vmem:[%s382] sm:$0xf]
      %399 = vst [vmem:[#allocation2 + $0x8] sm:$0xf] %v398
      %v400 = vld [vmem:[#allocation2] sm:$0xf]
      %v401 = vld [vmem:[#allocation2 + $0x4] sm:$0xf]
      %v402 = vld [vmem:[#allocation2 + $0x8] sm:$0x1]
      %403 = vst [vmem:[#allocation3] sm:$0xf] %v400
      %404 = vst [vmem:[#allocation3 + $0xc] sm:$0xf] %v401
      %405 = vst [vmem:[#allocation3 + $0x18] sm:$0x1] %v402
      %v406 = vld [vmem:[#allocation2] sm:$0xf]
      %v407 = vld [vmem:[#allocation2 + $0x4] sm:$0xf]
      %v408 = vld [vmem:[#allocation2 + $0x8] sm:$0x3]
      %vm409 = vsmask.f32 3328
      %vm410 = vsmask.f32 7440
      %vm411 = vmor %vm409, %vm410
      %v413 = vshrl.u32 %v406, 16
      %v415 = vrot.slane %v413, 4
      %v416 = vshll.u32 %v406, 16
      %v418 = vrot.slane %v416, 5
      %v419 = vor.u32 %v415, %v418
      %v420 = vrot.slane %v419, 4
      %v422 = vshll.u32 %v407, 16
      %v424 = vrot.slane %v422, 5
      %v425 = vsel %vm411, %v420, %v424
      %v426 = vshrl.u32 %v407, 16
      %v428 = vrot.slane %v426, 4
      %v429 = vor.u32 %v428, %v424
      %v430 = vrot.slane %v429, 4
      %v432 = vshll.u32 %v408, 16
      %v434 = vrot.slane %v432, 5
      %v435 = vsel %vm411, %v430, %v434
      %v436 = vshrl.u32 %v408, 16
      %v438 = vrot.slane %v436, 4
      %v439 = vor.u32 %v438, %v434
      %v440 = vrot.slane %v439, 4
      %444 = vst [vmem:[#allocation3 + $0x4] sm:$0xf] %v425
      %445 = vst [vmem:[#allocation3 + $0x10] sm:$0xf] %v435
      %446 = vst [vmem:[#allocation3 + $0x1c] sm:$0x1] %v440
      %v447 = vld [vmem:[#allocation2] sm:$0xe]
      %v448 = vld [vmem:[#allocation2 + $0x4] sm:$0xf]
      %v449 = vld [vmem:[#allocation2 + $0x8] sm:$0x3]
      %vm453 = vcmask 1042432
      %vm454 = vcmask 1046532
      %vm455 = vmor %vm453, %vm454
      %v456 = vrot.slane %v447, 5
      %v457 = vrot.slane %v456, 4
      %v458 = vrot.slane %v448, 5
      %v459 = vsel %vm455, %v457, %v458
      %v460 = vrot.slane %v458, 4
      %v461 = vrot.slane %v449, 5
      %v462 = vsel %vm455, %v460, %v461
      %v463 = vrot.slane %v461, 4
      %467 = vst [vmem:[#allocation3 + $0x8] sm:$0xf] %v459
      %468 = vst [vmem:[#allocation3 + $0x14] sm:$0xf] %v462
      %469 = vst [vmem:[#allocation3 + $0x20] sm:$0x1] %v463
      %v470 = vld [vmem:[#allocation3] sm:$0xff]
      %v471 = vld [vmem:[#allocation3 + $0x8] sm:$0xf]
      %v472 = vld [vmem:[#allocation3 + $0xc] sm:$0xff]
      %v473 = vld [vmem:[#allocation3 + $0x14] sm:$0xf]
      %v474 = vld [vmem:[#allocation3 + $0x18] sm:$0x11]
      %v475 = vld [vmem:[#allocation3 + $0x20] sm:$0x1]
      %v476 = vld [vmem:[%s2] sm:$0xf]
      %v477 = vld [vmem:[%s2 + $0x4] sm:$0xf]
      %v478 = vld [vmem:[%s2 + $0x8] sm:$0xf]
      %v479 = vld [vmem:[%s2 + $0xc] sm:$0xf]
      %v480 = vld [vmem:[%s2 + $0x10] sm:$0xf]
      %v481 = vld [vmem:[%s2 + $0x14] sm:$0xf]
      %v482 = vld [vmem:[%s2 + $0x18] sm:$0xf]
      %v483 = vld [vmem:[%s2 + $0x1c] sm:$0xf]
      %v484 = vld [vmem:[%s2 + $0x20] sm:$0xf]
      %v485 = vld [vmem:[%s2 + $0x24] sm:$0xf]
      %v486 = vld [vmem:[%s2 + $0x28] sm:$0xf]
      %v487 = vld [vmem:[%s2 + $0x2c] sm:$0xf]
      %v488 = vld [vmem:[%s2 + $0x30] sm:$0xf]
      %v489 = vld [vmem:[%s2 + $0x34] sm:$0xf]
      %v490 = vld [vmem:[%s2 + $0x38] sm:$0xf]
      %v491 = vld [vmem:[%s2 + $0x3c] sm:$0xf]
      %v492 = vld [vmem:[%s2 + $0x40] sm:$0xf]
      %v493 = vld [vmem:[%s2 + $0x44] sm:$0xf]
      %v494 = vld [vmem:[%s2 + $0x48] sm:$0xf]
      %v495 = vld [vmem:[%s2 + $0x4c] sm:$0xf]
      %v496 = vld [vmem:[%s2 + $0x50] sm:$0xf]
      %v497 = vld [vmem:[%s2 + $0x54] sm:$0xf]
      %v498 = vld [vmem:[%s2 + $0x58] sm:$0xf]
      %v499 = vld [vmem:[%s2 + $0x5c] sm:$0xf]
      %v500 = vld [vmem:[%s2 + $0x60] sm:$0xf]
      %v501 = vld [vmem:[%s2 + $0x64] sm:$0xf]
      %v502 = vld [vmem:[%s2 + $0x68] sm:$0xf]
      %v503 = vld [vmem:[%s2 + $0x6c] sm:$0xf]
      %v504 = vld [vmem:[%s2 + $0x70] sm:$0xf]
      %v505 = vld [vmem:[%s2 + $0x74] sm:$0xf]
      %v506 = vld [vmem:[%s2 + $0x78] sm:$0xf]
      %v507 = vld [vmem:[%s2 + $0x7c] sm:$0xf]
      %v508 = vld [vmem:[%s2 + $0x80] sm:$0xf]
      %v509 = vld [vmem:[%s2 + $0x84] sm:$0xf]
      %v510 = vld [vmem:[%s2 + $0x88] sm:$0xf]
      %v511 = vld [vmem:[%s2 + $0x8c] sm:$0xf]
      %v512 = vld [vmem:[%s2 + $0x90] sm:$0xf]
      %v513 = vld [vmem:[%s2 + $0x94] sm:$0xf]
      %v514 = vld [vmem:[%s2 + $0x98] sm:$0xf]
      %v515 = vld [vmem:[%s2 + $0x9c] sm:$0xf]
      %v516 = vld [vmem:[%s2 + $0xa0] sm:$0xf]
      %v517 = vld [vmem:[%s2 + $0xa4] sm:$0xf]
      %v518 = vld [vmem:[%s2 + $0xa8] sm:$0xf]
      %v519 = vld [vmem:[%s2 + $0xac] sm:$0xf]
      %v520 = vld [vmem:[%s2 + $0xb0] sm:$0xf]
      %v521 = vld [vmem:[%s2 + $0xb4] sm:$0xf]
      %v522 = vld [vmem:[%s2 + $0xb8] sm:$0xf]
      %v523 = vld [vmem:[%s2 + $0xbc] sm:$0xf]
      %v524 = vld [vmem:[%s4] sm:$0x1]
      %v526 = vlaneseq
      %v527 = vshrl.u32 %v526, 7
      %v528 = vsub.s32 0, %v527
      %v529 = vrot.slane %v524, %v528
      %v537 = vunpack.c.l.b16 %v470
      %v538 = vunpack.c.h.b16 %v470
      %v539 = vunpack.c.l.b16 %v471
      %v540 = vunpack.c.l.b16 %v472
      %v541 = vunpack.c.h.b16 %v472
      %v542 = vunpack.c.l.b16 %v473
      %v543 = vunpack.c.l.b16 %v474
      %v544 = vunpack.c.h.b16 %v474
      %v545 = vunpack.c.l.b16 %v475
      %v546 = vpack.c.b16 %v540, %v537
      %v547 = vpack.c.b16 %v541, %v538
      %v548 = vpack.c.b16 %v542, %v539
      %v549 = vpack.c.b16 %v543, %v543
      %v550 = vpack.c.b16 %v544, %v544
      %v551 = vpack.c.b16 %v545, %v545
      %v606 = vunpack.c.l.b16 %v476
      %v607 = vunpack.c.l.b16 %v477
      %v608 = vunpack.c.l.b16 %v478
      %v609 = vunpack.c.l.b16 %v479
      %v610 = vunpack.c.l.b16 %v480
      %v611 = vunpack.c.l.b16 %v481
      %v612 = vunpack.c.l.b16 %v482
      %v613 = vunpack.c.l.b16 %v483
      %v614 = vunpack.c.l.b16 %v484
      %v615 = vunpack.c.l.b16 %v485
      %v616 = vunpack.c.l.b16 %v486
      %v617 = vunpack.c.l.b16 %v487
      %v618 = vunpack.c.l.b16 %v488
      %v619 = vunpack.c.l.b16 %v489
      %v620 = vunpack.c.l.b16 %v490
      %v621 = vunpack.c.l.b16 %v491
      %v622 = vunpack.c.l.b16 %v492
      %v623 = vunpack.c.l.b16 %v493
      %v624 = vunpack.c.l.b16 %v494
      %v625 = vunpack.c.l.b16 %v495
      %v626 = vunpack.c.l.b16 %v496
      %v627 = vunpack.c.l.b16 %v497
      %v628 = vunpack.c.l.b16 %v498
      %v629 = vunpack.c.l.b16 %v499
      %v630 = vunpack.c.l.b16 %v500
      %v631 = vunpack.c.l.b16 %v501
      %v632 = vunpack.c.l.b16 %v502
      %v633 = vunpack.c.l.b16 %v503
      %v634 = vunpack.c.l.b16 %v504
      %v635 = vunpack.c.l.b16 %v505
      %v636 = vunpack.c.l.b16 %v506
      %v637 = vunpack.c.l.b16 %v507
      %v638 = vunpack.c.l.b16 %v508
      %v639 = vunpack.c.l.b16 %v509
      %v640 = vunpack.c.l.b16 %v510
      %v641 = vunpack.c.l.b16 %v511
      %v642 = vunpack.c.l.b16 %v512
      %v643 = vunpack.c.l.b16 %v513
      %v644 = vunpack.c.l.b16 %v514
      %v645 = vunpack.c.l.b16 %v515
      %v646 = vunpack.c.l.b16 %v516
      %v647 = vunpack.c.l.b16 %v517
      %v648 = vunpack.c.l.b16 %v518
      %v649 = vunpack.c.l.b16 %v519
      %v650 = vunpack.c.l.b16 %v520
      %v651 = vunpack.c.l.b16 %v521
      %v652 = vunpack.c.l.b16 %v522
      %v653 = vunpack.c.l.b16 %v523
      %v654 = vpack.c.b16 %v607, %v606
      %v655 = vpack.c.b16 %v609, %v608
      %v656 = vpack.c.b16 %v611, %v610
      %v657 = vpack.c.b16 %v613, %v612
      %v658 = vpack.c.b16 %v615, %v614
      %v659 = vpack.c.b16 %v617, %v616
      %v660 = vpack.c.b16 %v619, %v618
      %v661 = vpack.c.b16 %v621, %v620
      %v662 = vpack.c.b16 %v623, %v622
      %v663 = vpack.c.b16 %v625, %v624
      %v664 = vpack.c.b16 %v627, %v626
      %v665 = vpack.c.b16 %v629, %v628
      %v666 = vpack.c.b16 %v631, %v630
      %v667 = vpack.c.b16 %v633, %v632
      %v668 = vpack.c.b16 %v635, %v634
      %v669 = vpack.c.b16 %v637, %v636
      %v670 = vpack.c.b16 %v639, %v638
      %v671 = vpack.c.b16 %v641, %v640
      %v672 = vpack.c.b16 %v643, %v642
      %v673 = vpack.c.b16 %v645, %v644
      %v674 = vpack.c.b16 %v647, %v646
      %v675 = vpack.c.b16 %v649, %v648
      %v676 = vpack.c.b16 %v651, %v650
      %v677 = vpack.c.b16 %v653, %v652
      %702 = vmatprep.subr.bf16.mxu0 0
      %703 = vmatpush1.bf16.msra.mxu0 %v654
      %704 = vmatprep.subr.bf16.mxu0 0
      %705 = vmatpush1.bf16.msra.mxu0 %v655
      %706 = vmatprep.subr.bf16.mxu0 0
      %707 = vmatpush1.bf16.msra.mxu0 %v656
      %708 = vmatprep.subr.bf16.mxu0 0
      %709 = vmatpush1.bf16.msra.mxu0 %v657
      %710 = vmatprep.subr.bf16.mxu0 0
      %711 = vmatpush1.bf16.msra.mxu0 %v658
      %712 = vmatprep.subr.bf16.mxu0 0
      %713 = vmatpush1.bf16.msra.mxu0 %v659
      %714 = vmatprep.subr.bf16.mxu0 0
      %715 = vmatpush1.bf16.msra.mxu0 %v660
      %716 = vmatprep.subr.bf16.mxu0 0
      %717 = vmatpush1.bf16.msra.mxu0 %v661
      %718 = vmatprep.subr.bf16.mxu0 0
      %719 = vmatpush1.bf16.msra.mxu0 %v662
      %720 = vmatprep.subr.bf16.mxu0 0
      %721 = vmatpush1.bf16.msra.mxu0 %v663
      %722 = vmatprep.subr.bf16.mxu0 0
      %723 = vmatpush1.bf16.msra.mxu0 %v664
      %724 = vmatprep.subr.bf16.mxu0 0
      %725 = vmatpush1.bf16.msra.mxu0 %v665
      %726 = vmatprep.subr.bf16.mxu0 0
      %727 = vmatpush1.bf16.msra.mxu0 %v666
      %728 = vmatprep.subr.bf16.mxu0 0
      %729 = vmatpush1.bf16.msra.mxu0 %v667
      %730 = vmatprep.subr.bf16.mxu0 0
      %731 = vmatpush1.bf16.msra.mxu0 %v668
      %732 = vmatprep.subr.bf16.mxu0 0
      %733 = vmatpush1.bf16.msra.mxu0 %v669
      %734 = vmatprep.mubr.bf16.mxu0 %v547
      %735 = vmatmul.mubr.bf16.gmra.mrb[0].mxu0 %v546
      %v736 = vpop.f32.mrb[0].mxu0
      %v737 = vadd.f32 %v529, %v736
      %v738 = vpop.f32.mrb[0].mxu0
      %v739 = vpop.f32.mrb[0].mxu0
      %v740 = vadd.f32 %v529, %v739
      %v741 = vpop.f32.mrb[0].mxu0
      %742 = vmatprep.mubr.bf16.mxu0 %v550
      %743 = vmatmul.mubr.bf16.gmra.mrb[0].mxu0 %v549
      %v744 = vpop.f32.mrb[0].mxu0
      %v745 = vadd.f32 %v529, %v744
      %v746 = vpop.f32.mrb[0].mxu0
      %v747 = vpop.f32.mrb[0].mxu0
      %v748 = vpop.f32.mrb[0].mxu0
      %749 = vdwg.mxu0
      %750 = vmatprep.subr.bf16.mxu0 0
      %751 = vmatpush1.bf16.msra.mxu0 %v670
      %752 = vmatprep.subr.bf16.mxu0 0
      %753 = vmatpush1.bf16.msra.mxu0 %v671
      %754 = vmatprep.subr.bf16.mxu0 0
      %755 = vmatpush1.bf16.msra.mxu0 %v672
      %756 = vmatprep.subr.bf16.mxu0 0
      %757 = vmatpush1.bf16.msra.mxu0 %v673
      %758 = vmatprep.subr.bf16.mxu0 0
      %759 = vmatpush1.bf16.msra.mxu0 %v674
      %760 = vmatprep.subr.bf16.mxu0 0
      %761 = vmatpush1.bf16.msra.mxu0 %v675
      %762 = vmatprep.subr.bf16.mxu0 0
      %763 = vmatpush1.bf16.msra.mxu0 %v676
      %764 = vmatprep.subr.bf16.mxu0 0
      %765 = vmatpush1.bf16.msra.mxu0 %v677
      %766 = vmatprep.subr.bf16.mxu0 0
      %767 = vmatpush1.bf16.msra.mxu0 0
      %768 = vmatprep.subr.bf16.mxu0 0
      %769 = vmatpush1.bf16.msra.mxu0 0
      %770 = vmatprep.subr.bf16.mxu0 0
      %771 = vmatpush1.bf16.msra.mxu0 0
      %772 = vmatprep.subr.bf16.mxu0 0
      %773 = vmatpush1.bf16.msra.mxu0 0
      %774 = vmatprep.subr.bf16.mxu0 0
      %775 = vmatpush1.bf16.msra.mxu0 0
      %776 = vmatprep.subr.bf16.mxu0 0
      %777 = vmatpush1.bf16.msra.mxu0 0
      %778 = vmatprep.subr.bf16.mxu0 0
      %779 = vmatpush1.bf16.msra.mxu0 0
      %780 = vmatprep.subr.bf16.mxu0 0
      %781 = vmatpush1.bf16.msra.mxu0 0
      %782 = vmatprep.mubr.bf16.mxu0 0
      %783 = vmatmul.mubr.bf16.gmra.mrb[0].mxu0 %v548
      %v784 = vpop.f32.mrb[0].mxu0
      %v785 = vadd.f32 %v737, %v784
      %v786 = vpop.f32.mrb[0].mxu0
      %v787 = vpop.f32.mrb[0].mxu0
      %v788 = vadd.f32 %v740, %v787
      %v789 = vpop.f32.mrb[0].mxu0
      %790 = vmatprep.mubr.bf16.mxu0 0
      %791 = vmatmul.mubr.bf16.gmra.mrb[0].mxu0 %v551
      %v792 = vpop.f32.mrb[0].mxu0
      %v793 = vadd.f32 %v745, %v792
      %v794 = vpop.f32.mrb[0].mxu0
      %v795 = vpop.f32.mrb[0].mxu0
      %v796 = vpop.f32.mrb[0].mxu0
      %797 = vdwg.mxu0
      %v798 = vmax.f32 %v785, 0.0
      %v799 = vmax.f32 %v788, 0.0
      %v800 = vmax.f32 %v793, 0.0
      %v801 = vlaneseq
      %v802 = vshrl.u32 %v801, 7
      %v803 = vadd.s32 %v802, 8
      %v804 = vadd.s32 %v802, 16
      %s805 = smul.u32 %s24, 16
      %s806 = ssub.s32 %s805, 1
      %v807 = vstv %s806
      %v808 = vadd.s32 %v807, %v802
      %v809 = vadd.s32 %v807, %v803
      %v810 = vadd.s32 %v807, %v804
      %vm811 = vcmp.ge.s32.totalorder %v808, 0
      %vm812 = vcmp.ge.s32.totalorder %v809, 0
      %vm813 = vcmp.ge.s32.totalorder %v810, 0
      %vm814 = vcmp.lt.s32.totalorder %v808, 16
      %vm815 = vcmp.lt.s32.totalorder %v809, 16
      %vm816 = vcmp.lt.s32.totalorder %v810, 16
      %vm817 = vmand %vm811, %vm814
      %vm818 = vmand %vm812, %vm815
      %vm819 = vmand %vm813, %vm816
      %v820 = vsel %vm817, 1, 0
      %v821 = vsel %vm818, 1, 0
      %v822 = vsel %vm819, 1, 0
      %vm823 = vcmp.eq.s32.totalorder %v820, 1
      %vm824 = vcmp.eq.s32.totalorder %v821, 1
      %vm825 = vcmp.eq.s32.totalorder %v822, 1
      %v826 = vsel %vm823, %v798, 0.0
      %v827 = vsel %vm824, %v799, 0.0
      %v828 = vsel %vm825, %v800, 0.0
      %v829 = vpack.c.bf16 %v827, %v826
      %v830 = vpack.c.bf16 %v828, %v828
      %831 = vst [vmem:[#allocation4] sm:$0xff] %v829
      %vm832 = vsmask.f32 7424
      %v834 = vshrl.u32 %v829, 16
      %v836 = vshll.u32 %v829, 16
      %v838 = vrot.slane %v836, 1
      %v839 = vor.u32 %v834, %v838
      %v841 = vshll.u32 %v830, 16
      %v843 = vrot.slane %v841, 1
      %v844 = vsel %vm832, %v839, %v843
      %846 = vst [vmem:[#allocation4 + $0x8] sm:$0xff] %v844
      %vm849 = vcmask 1046528
      %v850 = vrot.slane %v829, 1
      %v851 = vrot.slane %v830, 1
      %v852 = vsel %vm849, %v850, %v851
      %854 = vst [vmem:[#allocation4 + $0x10] sm:$0xff] %v852
      %v855 = vld [vmem:[#allocation4] sm:$0xff]
      %v856 = vld [vmem:[#allocation4 + $0x8] sm:$0xff]
      %v857 = vld [vmem:[#allocation4 + $0x10] sm:$0xff]
      %v858 = vld [vmem:[%s3] sm:$0xf]
      %v859 = vld [vmem:[%s3 + $0x4] sm:$0xf]
      %v860 = vld [vmem:[%s3 + $0x8] sm:$0xf]
      %v861 = vld [vmem:[%s3 + $0xc] sm:$0xf]
      %v862 = vld [vmem:[%s3 + $0x10] sm:$0xf]
      %v863 = vld [vmem:[%s3 + $0x14] sm:$0xf]
      %v864 = vld [vmem:[%s3 + $0x18] sm:$0xf]
      %v865 = vld [vmem:[%s3 + $0x1c] sm:$0xf]
      %v866 = vld [vmem:[%s3 + $0x20] sm:$0xf]
      %v867 = vld [vmem:[%s3 + $0x24] sm:$0xf]
      %v868 = vld [vmem:[%s3 + $0x28] sm:$0xf]
      %v869 = vld [vmem:[%s3 + $0x2c] sm:$0xf]
      %v870 = vld [vmem:[%s3 + $0x30] sm:$0xf]
      %v871 = vld [vmem:[%s3 + $0x34] sm:$0xf]
      %v872 = vld [vmem:[%s3 + $0x38] sm:$0xf]
      %v873 = vld [vmem:[%s3 + $0x3c] sm:$0xf]
      %v874 = vld [vmem:[%s3 + $0x40] sm:$0xf]
      %v875 = vld [vmem:[%s3 + $0x44] sm:$0xf]
      %v876 = vld [vmem:[%s3 + $0x48] sm:$0xf]
      %v877 = vld [vmem:[%s3 + $0x4c] sm:$0xf]
      %v878 = vld [vmem:[%s3 + $0x50] sm:$0xf]
      %v879 = vld [vmem:[%s3 + $0x54] sm:$0xf]
      %v880 = vld [vmem:[%s3 + $0x58] sm:$0xf]
      %v881 = vld [vmem:[%s3 + $0x5c] sm:$0xf]
      %v882 = vld [vmem:[%s3 + $0x60] sm:$0xf]
      %v883 = vld [vmem:[%s3 + $0x64] sm:$0xf]
      %v884 = vld [vmem:[%s3 + $0x68] sm:$0xf]
      %v885 = vld [vmem:[%s3 + $0x6c] sm:$0xf]
      %v886 = vld [vmem:[%s3 + $0x70] sm:$0xf]
      %v887 = vld [vmem:[%s3 + $0x74] sm:$0xf]
      %v888 = vld [vmem:[%s3 + $0x78] sm:$0xf]
      %v889 = vld [vmem:[%s3 + $0x7c] sm:$0xf]
      %v890 = vld [vmem:[%s3 + $0x80] sm:$0xf]
      %v891 = vld [vmem:[%s3 + $0x84] sm:$0xf]
      %v892 = vld [vmem:[%s3 + $0x88] sm:$0xf]
      %v893 = vld [vmem:[%s3 + $0x8c] sm:$0xf]
      %v894 = vld [vmem:[%s3 + $0x90] sm:$0xf]
      %v895 = vld [vmem:[%s3 + $0x94] sm:$0xf]
      %v896 = vld [vmem:[%s3 + $0x98] sm:$0xf]
      %v897 = vld [vmem:[%s3 + $0x9c] sm:$0xf]
      %v898 = vld [vmem:[%s3 + $0xa0] sm:$0xf]
      %v899 = vld [vmem:[%s3 + $0xa4] sm:$0xf]
      %v900 = vld [vmem:[%s3 + $0xa8] sm:$0xf]
      %v901 = vld [vmem:[%s3 + $0xac] sm:$0xf]
      %v902 = vld [vmem:[%s3 + $0xb0] sm:$0xf]
      %v903 = vld [vmem:[%s3 + $0xb4] sm:$0xf]
      %v904 = vld [vmem:[%s3 + $0xb8] sm:$0xf]
      %v905 = vld [vmem:[%s3 + $0xbc] sm:$0xf]
      %v906 = vld [vmem:[%s5] sm:$0x1]
      %v908 = vlaneseq
      %v909 = vshrl.u32 %v908, 7
      %v910 = vsub.s32 0, %v909
      %v911 = vrot.slane %v906, %v910
      %v961 = vunpack.c.l.b16 %v858
      %v962 = vunpack.c.l.b16 %v859
      %v963 = vunpack.c.l.b16 %v860
      %v964 = vunpack.c.l.b16 %v861
      %v965 = vunpack.c.l.b16 %v862
      %v966 = vunpack.c.l.b16 %v863
      %v967 = vunpack.c.l.b16 %v864
      %v968 = vunpack.c.l.b16 %v865
      %v969 = vunpack.c.l.b16 %v866
      %v970 = vunpack.c.l.b16 %v867
      %v971 = vunpack.c.l.b16 %v868
      %v972 = vunpack.c.l.b16 %v869
      %v973 = vunpack.c.l.b16 %v870
      %v974 = vunpack.c.l.b16 %v871
      %v975 = vunpack.c.l.b16 %v872
      %v976 = vunpack.c.l.b16 %v873
      %v977 = vunpack.c.l.b16 %v874
      %v978 = vunpack.c.l.b16 %v875
      %v979 = vunpack.c.l.b16 %v876
      %v980 = vunpack.c.l.b16 %v877
      %v981 = vunpack.c.l.b16 %v878
      %v982 = vunpack.c.l.b16 %v879
      %v983 = vunpack.c.l.b16 %v880
      %v984 = vunpack.c.l.b16 %v881
      %v985 = vunpack.c.l.b16 %v882
      %v986 = vunpack.c.l.b16 %v883
      %v987 = vunpack.c.l.b16 %v884
      %v988 = vunpack.c.l.b16 %v885
      %v989 = vunpack.c.l.b16 %v886
      %v990 = vunpack.c.l.b16 %v887
      %v991 = vunpack.c.l.b16 %v888
      %v992 = vunpack.c.l.b16 %v889
      %v993 = vunpack.c.l.b16 %v890
      %v994 = vunpack.c.l.b16 %v891
      %v995 = vunpack.c.l.b16 %v892
      %v996 = vunpack.c.l.b16 %v893
      %v997 = vunpack.c.l.b16 %v894
      %v998 = vunpack.c.l.b16 %v895
      %v999 = vunpack.c.l.b16 %v896
      %v1000 = vunpack.c.l.b16 %v897
      %v1001 = vunpack.c.l.b16 %v898
      %v1002 = vunpack.c.l.b16 %v899
      %v1003 = vunpack.c.l.b16 %v900
      %v1004 = vunpack.c.l.b16 %v901
      %v1005 = vunpack.c.l.b16 %v902
      %v1006 = vunpack.c.l.b16 %v903
      %v1007 = vunpack.c.l.b16 %v904
      %v1008 = vunpack.c.l.b16 %v905
      %v1009 = vpack.c.b16 %v962, %v961
      %v1010 = vpack.c.b16 %v964, %v963
      %v1011 = vpack.c.b16 %v966, %v965
      %v1012 = vpack.c.b16 %v968, %v967
      %v1013 = vpack.c.b16 %v970, %v969
      %v1014 = vpack.c.b16 %v972, %v971
      %v1015 = vpack.c.b16 %v974, %v973
      %v1016 = vpack.c.b16 %v976, %v975
      %v1017 = vpack.c.b16 %v978, %v977
      %v1018 = vpack.c.b16 %v980, %v979
      %v1019 = vpack.c.b16 %v982, %v981
      %v1020 = vpack.c.b16 %v984, %v983
      %v1021 = vpack.c.b16 %v986, %v985
      %v1022 = vpack.c.b16 %v988, %v987
      %v1023 = vpack.c.b16 %v990, %v989
      %v1024 = vpack.c.b16 %v992, %v991
      %v1025 = vpack.c.b16 %v994, %v993
      %v1026 = vpack.c.b16 %v996, %v995
      %v1027 = vpack.c.b16 %v998, %v997
      %v1028 = vpack.c.b16 %v1000, %v999
      %v1029 = vpack.c.b16 %v1002, %v1001
      %v1030 = vpack.c.b16 %v1004, %v1003
      %v1031 = vpack.c.b16 %v1006, %v1005
      %v1032 = vpack.c.b16 %v1008, %v1007
      %1057 = vmatprep.subr.bf16.mxu0 0
      %1058 = vmatpush1.bf16.msra.mxu0 %v1009
      %1059 = vmatprep.subr.bf16.mxu0 0
      %1060 = vmatpush1.bf16.msra.mxu0 %v1010
      %1061 = vmatprep.subr.bf16.mxu0 0
      %1062 = vmatpush1.bf16.msra.mxu0 %v1011
      %1063 = vmatprep.subr.bf16.mxu0 0
      %1064 = vmatpush1.bf16.msra.mxu0 %v1012
      %1065 = vmatprep.subr.bf16.mxu0 0
      %1066 = vmatpush1.bf16.msra.mxu0 %v1013
      %1067 = vmatprep.subr.bf16.mxu0 0
      %1068 = vmatpush1.bf16.msra.mxu0 %v1014
      %1069 = vmatprep.subr.bf16.mxu0 0
      %1070 = vmatpush1.bf16.msra.mxu0 %v1015
      %1071 = vmatprep.subr.bf16.mxu0 0
      %1072 = vmatpush1.bf16.msra.mxu0 %v1016
      %1073 = vmatprep.subr.bf16.mxu0 0
      %1074 = vmatpush1.bf16.msra.mxu0 %v1017
      %1075 = vmatprep.subr.bf16.mxu0 0
      %1076 = vmatpush1.bf16.msra.mxu0 %v1018
      %1077 = vmatprep.subr.bf16.mxu0 0
      %1078 = vmatpush1.bf16.msra.mxu0 %v1019
      %1079 = vmatprep.subr.bf16.mxu0 0
      %1080 = vmatpush1.bf16.msra.mxu0 %v1020
      %1081 = vmatprep.subr.bf16.mxu0 0
      %1082 = vmatpush1.bf16.msra.mxu0 %v1021
      %1083 = vmatprep.subr.bf16.mxu0 0
      %1084 = vmatpush1.bf16.msra.mxu0 %v1022
      %1085 = vmatprep.subr.bf16.mxu0 0
      %1086 = vmatpush1.bf16.msra.mxu0 %v1023
      %1087 = vmatprep.subr.bf16.mxu0 0
      %1088 = vmatpush1.bf16.msra.mxu0 %v1024
      %1089 = vmatprep.mubr.bf16.mxu0 %v856
      %1090 = vmatmul.mubr.bf16.gmra.mrb[0].mxu0 %v855
      %v1091 = vpop.f32.mrb[0].mxu0
      %v1092 = vadd.f32 %v911, %v1091
      %v1093 = vpop.f32.mrb[0].mxu0
      %v1094 = vpop.f32.mrb[0].mxu0
      %v1095 = vadd.f32 %v911, %v1094
      %v1096 = vpop.f32.mrb[0].mxu0
      %1097 = vdwg.mxu0
      %1098 = vmatprep.subr.bf16.mxu0 0
      %1099 = vmatpush1.bf16.msra.mxu0 %v1025
      %1100 = vmatprep.subr.bf16.mxu0 0
      %1101 = vmatpush1.bf16.msra.mxu0 %v1026
      %1102 = vmatprep.subr.bf16.mxu0 0
      %1103 = vmatpush1.bf16.msra.mxu0 %v1027
      %1104 = vmatprep.subr.bf16.mxu0 0
      %1105 = vmatpush1.bf16.msra.mxu0 %v1028
      %1106 = vmatprep.subr.bf16.mxu0 0
      %1107 = vmatpush1.bf16.msra.mxu0 %v1029
      %1108 = vmatprep.subr.bf16.mxu0 0
      %1109 = vmatpush1.bf16.msra.mxu0 %v1030
      %1110 = vmatprep.subr.bf16.mxu0 0
      %1111 = vmatpush1.bf16.msra.mxu0 %v1031
      %1112 = vmatprep.subr.bf16.mxu0 0
      %1113 = vmatpush1.bf16.msra.mxu0 %v1032
      %1114 = vmatprep.subr.bf16.mxu0 0
      %1115 = vmatpush1.bf16.msra.mxu0 0
      %1116 = vmatprep.subr.bf16.mxu0 0
      %1117 = vmatpush1.bf16.msra.mxu0 0
      %1118 = vmatprep.subr.bf16.mxu0 0
      %1119 = vmatpush1.bf16.msra.mxu0 0
      %1120 = vmatprep.subr.bf16.mxu0 0
      %1121 = vmatpush1.bf16.msra.mxu0 0
      %1122 = vmatprep.subr.bf16.mxu0 0
      %1123 = vmatpush1.bf16.msra.mxu0 0
      %1124 = vmatprep.subr.bf16.mxu0 0
      %1125 = vmatpush1.bf16.msra.mxu0 0
      %1126 = vmatprep.subr.bf16.mxu0 0
      %1127 = vmatpush1.bf16.msra.mxu0 0
      %1128 = vmatprep.subr.bf16.mxu0 0
      %1129 = vmatpush1.bf16.msra.mxu0 0
      %1130 = vmatprep.mubr.bf16.mxu0 0
      %1131 = vmatmul.mubr.bf16.gmra.mrb[0].mxu0 %v857
      %v1132 = vpop.f32.mrb[0].mxu0
      %v1133 = vadd.f32 %v1092, %v1132
      %v1134 = vpop.f32.mrb[0].mxu0
      %v1135 = vpop.f32.mrb[0].mxu0
      %v1136 = vadd.f32 %v1095, %v1135
      %v1137 = vpop.f32.mrb[0].mxu0
      %1138 = vdwg.mxu0
      %v1139 = vld [vmem:[#allocation2] sm:$0xe]
      %v1140 = vld [vmem:[#allocation2 + $0x4] sm:$0xf]
      %v1141 = vld [vmem:[#allocation2 + $0x8] sm:$0x1]
      %v1142 = vld [vmem:[%s6] sm:$0xf]
      %v1143 = vld [vmem:[%s6 + $0x4] sm:$0xf]
      %v1144 = vld [vmem:[%s6 + $0x8] sm:$0xf]
      %v1145 = vld [vmem:[%s6 + $0xc] sm:$0xf]
      %v1146 = vld [vmem:[%s6 + $0x10] sm:$0xf]
      %v1147 = vld [vmem:[%s6 + $0x14] sm:$0xf]
      %v1148 = vld [vmem:[%s6 + $0x18] sm:$0xf]
      %v1149 = vld [vmem:[%s6 + $0x1c] sm:$0xf]
      %v1150 = vld [vmem:[%s6 + $0x20] sm:$0xf]
      %v1151 = vld [vmem:[%s6 + $0x24] sm:$0xf]
      %v1152 = vld [vmem:[%s6 + $0x28] sm:$0xf]
      %v1153 = vld [vmem:[%s6 + $0x2c] sm:$0xf]
      %v1154 = vld [vmem:[%s6 + $0x30] sm:$0xf]
      %v1155 = vld [vmem:[%s6 + $0x34] sm:$0xf]
      %v1156 = vld [vmem:[%s6 + $0x38] sm:$0xf]
      %v1157 = vld [vmem:[%s6 + $0x3c] sm:$0xf]
      %v1158 = vld [vmem:[%s7] sm:$0x1]
      %v1160 = vlaneseq
      %v1161 = vshrl.u32 %v1160, 7
      %v1162 = vsub.s32 0, %v1161
      %v1163 = vrot.slane %v1158, %v1162
      %v1168 = vunpack.c.l.b16 %v1139
      %v1169 = vunpack.c.l.b16 %v1140
      %v1170 = vunpack.c.l.b16 %v1141
      %v1171 = vpack.c.b16 %v1169, %v1168
      %v1172 = vpack.c.b16 %v1170, %v1170
      %v1173 = vrot.slane %v1171, 1
      %v1174 = vrot.slane %v1172, 1
      %v1175 = vsel %vm849, %v1173, %v1174
      %v1193 = vunpack.c.l.b16 %v1142
      %v1194 = vunpack.c.l.b16 %v1143
      %v1195 = vunpack.c.l.b16 %v1144
      %v1196 = vunpack.c.l.b16 %v1145
      %v1197 = vunpack.c.l.b16 %v1146
      %v1198 = vunpack.c.l.b16 %v1147
      %v1199 = vunpack.c.l.b16 %v1148
      %v1200 = vunpack.c.l.b16 %v1149
      %v1201 = vunpack.c.l.b16 %v1150
      %v1202 = vunpack.c.l.b16 %v1151
      %v1203 = vunpack.c.l.b16 %v1152
      %v1204 = vunpack.c.l.b16 %v1153
      %v1205 = vunpack.c.l.b16 %v1154
      %v1206 = vunpack.c.l.b16 %v1155
      %v1207 = vunpack.c.l.b16 %v1156
      %v1208 = vunpack.c.l.b16 %v1157
      %v1209 = vpack.c.b16 %v1194, %v1193
      %v1210 = vpack.c.b16 %v1196, %v1195
      %v1211 = vpack.c.b16 %v1198, %v1197
      %v1212 = vpack.c.b16 %v1200, %v1199
      %v1213 = vpack.c.b16 %v1202, %v1201
      %v1214 = vpack.c.b16 %v1204, %v1203
      %v1215 = vpack.c.b16 %v1206, %v1205
      %v1216 = vpack.c.b16 %v1208, %v1207
      %1225 = vmatprep.subr.bf16.mxu0 0
      %1226 = vmatpush1.bf16.msra.mxu0 %v1209
      %1227 = vmatprep.subr.bf16.mxu0 0
      %1228 = vmatpush1.bf16.msra.mxu0 %v1210
      %1229 = vmatprep.subr.bf16.mxu0 0
      %1230 = vmatpush1.bf16.msra.mxu0 %v1211
      %1231 = vmatprep.subr.bf16.mxu0 0
      %1232 = vmatpush1.bf16.msra.mxu0 %v1212
      %1233 = vmatprep.subr.bf16.mxu0 0
      %1234 = vmatpush1.bf16.msra.mxu0 %v1213
      %1235 = vmatprep.subr.bf16.mxu0 0
      %1236 = vmatpush1.bf16.msra.mxu0 %v1214
      %1237 = vmatprep.subr.bf16.mxu0 0
      %1238 = vmatpush1.bf16.msra.mxu0 %v1215
      %1239 = vmatprep.subr.bf16.mxu0 0
      %1240 = vmatpush1.bf16.msra.mxu0 %v1216
      %1241 = vmatprep.subr.bf16.mxu0 0
      %1242 = vmatpush1.bf16.msra.mxu0 0
      %1243 = vmatprep.subr.bf16.mxu0 0
      %1244 = vmatpush1.bf16.msra.mxu0 0
      %1245 = vmatprep.subr.bf16.mxu0 0
      %1246 = vmatpush1.bf16.msra.mxu0 0
      %1247 = vmatprep.subr.bf16.mxu0 0
      %1248 = vmatpush1.bf16.msra.mxu0 0
      %1249 = vmatprep.subr.bf16.mxu0 0
      %1250 = vmatpush1.bf16.msra.mxu0 0
      %1251 = vmatprep.subr.bf16.mxu0 0
      %1252 = vmatpush1.bf16.msra.mxu0 0
      %1253 = vmatprep.subr.bf16.mxu0 0
      %1254 = vmatpush1.bf16.msra.mxu0 0
      %1255 = vmatprep.subr.bf16.mxu0 0
      %1256 = vmatpush1.bf16.msra.mxu0 0
      %1257 = vmatprep.mubr.bf16.mxu0 0
      %1258 = vmatmul.mubr.bf16.gmra.mrb[0].mxu0 %v1175
      %v1259 = vpop.f32.mrb[0].mxu0
      %v1260 = vadd.f32 %v1163, %v1259
      %v1261 = vpop.f32.mrb[0].mxu0
      %v1262 = vpop.f32.mrb[0].mxu0
      %v1263 = vadd.f32 %v1163, %v1262
      %v1264 = vpop.f32.mrb[0].mxu0
      %1265 = vdwg.mxu0
      %v1266 = vadd.f32 %v1133, %v1260
      %v1267 = vadd.f32 %v1136, %v1263
      %v1268 = vmax.f32 %v1266, 0.0
      %v1269 = vmax.f32 %v1267, 0.0
      %1270 = vst [vmem:[%s391] sm:$0xff] %v1268
      %1271 = vst [vmem:[%s391 + $0x8] sm:$0xff] %v1269
      %s1272 = smul.u32 2, %s24
      %p1273 = scmp.lt.s32.totalorder %s23, 1
      %s1274 = scalar_select %p1273, %s23, 1
      %p1275 = scmp.lt.s32.totalorder %s1272, 1
      %s1276 = scalar_select %p1275, %s1272, 1
      %s1277 = smul.addr %s1274, 2
      %s1278 = sadd.s32 %s1276, %s1277
      %s1279 = smul.addr %s1278, 8
      %s1280 = scalar_lea.vmem %s8, %s1279
      // Predicated region
      $region53: #{residual_conv1d_block.1} parent=51 // pred_check
        %p1281 = pneg %p233
      $region54: #{residual_conv1d_block.1} parent=51 // pred_check_branch
        %1283 = sbr.rel (%p1281) target = $region56
      $region55: #{residual_conv1d_block.1} parent=51 // pred_region
        %s1284 = smul.u32 2, %s24
      $region56: #{residual_conv1d_block.1} parent=51 // pred_fallthru
        _
    $region52: #{residual_conv1d_block.1} parent=5 // pred_fallthru
      _
    %p1285 = scmp.le.s32.totalorder 2, %s14
    // Predicated region
    $region57: #{residual_conv1d_block.1} parent=5 // pred_check
      %p1286 = pneg %p1285
    $region58: #{residual_conv1d_block.1} parent=5 // pred_check_branch
      %1288 = sbr.rel (%p1286) target = $region60
    $region59: #{residual_conv1d_block.1} parent=5 // pred_region
      %s1289 = ssub.s32 %s14, 2
      // Predicated region
      $region61: #{residual_conv1d_block.1} parent=59 // pred_check
        %p1290 = pneg %p239
      $region62: #{residual_conv1d_block.1} parent=59 // pred_check_branch
        %1292 = sbr.rel (%p1290) target = $region64
      $region63: #{residual_conv1d_block.1} parent=59 // pred_region
        %s1293 = smul.u32 2, %s26
        %p1294 = scmp.lt.s32.totalorder %s25, 1
        %s1295 = scalar_select %p1294, %s25, 1
        %p1296 = scmp.lt.s32.totalorder %s1293, 1
        %s1297 = scalar_select %p1296, %s1293, 1
        %s1298 = smul.addr %s1295, 2
        %s1299 = sadd.s32 %s1297, %s1298
        %s1300 = smul.addr %s1299, 8
        %s1301 = scalar_lea.vmem %s8, %s1300
      $region64: #{residual_conv1d_block.1} parent=59 // pred_fallthru
        _
    $region60: #{residual_conv1d_block.1} parent=5 // pred_fallthru
      _
  $region6: #{residual_conv1d_block.1} parent=0 // loop_footer
    %s18 = sadd.s32 1, %s14
  $region7: #{residual_conv1d_block.1} parent=0 // loop_footer_branch
    %13 = sbr.rel target = $region3
  $region8: #{residual_conv1d_block.1} parent=0 // loop_exit
    _

</llo_original>
